<compile_context>
chip_gen: v7x
topology: tpu7x:2x2x1
jax: 0.10.0
libtpu: 0.0.40
codegen_flags: <defaults>
</compile_context>

<pallas_src>
import functools

import jax
import jax.numpy as jnp
from jax.experimental import pallas as pl
from jax.experimental.pallas import tpu as pltpu

FPAD = 128   # lane-dense padded feature width (multiple of 128)
EPS = 1e-5   # nn.BatchNorm1d default eps


def mlp_predictor_kernel(x_ref, wh_ref, ph_ref, wo_ref, po_ref, o_ref, h_pad):
    """Fused MLPPredictor forward.

    x_ref  : [B, F_IN]        unpadded input features (full block)
    wh_ref : [L, FPAD, FPAD]  per-layer Linear weights, zero-padded, bf16
    ph_ref : [L, 8, FPAD]     packed per-layer params (f32): row0=bias,
                              row1=gamma, row2=beta (padded lanes are zero)
    wo_ref : [FPAD, FPAD]     output Linear weight, zero-padded, bf16
    po_ref : [8, FPAD]        row0 = output Linear bias (f32), zero-padded
    o_ref  : [B, FPAD]        lane-dense padded output (sliced outside)
    h_pad  : [B, FPAD] f32    VMEM scratch used to zero-extend the input
    """
    fin = x_ref.shape[1]

    # In-kernel zero-extension of the input to 128 lanes (no wrapper-side pad).
    h_pad[...] = jnp.zeros_like(h_pad)
    h_pad[:, 0:fin] = x_ref[...]
    h = h_pad[...]                                     # [B, FPAD] f32

    n_layers = wh_ref.shape[0]
    inv_b = 1.0 / h.shape[0]

    for l in range(n_layers):  # static unroll; L is small and known at trace time
        # Dropout(p) before Linear: deterministic identity here.
        # TODO(synk): stochastic training-mode dropout (pltpu.prng_*) not implemented.
        z = jnp.dot(h.astype(jnp.bfloat16), wh_ref[l],
                    preferred_element_type=jnp.float32)          # [B, FPAD] f32
        z = jnp.maximum(z + ph_ref[l, 0:1, :], 0.0)               # +bias, ReLU

        # BatchNorm1d with training-mode batch stats, fused single pass:
        # mean & E[z^2] in one traversal, then fold into scale/shift.
        mean = jnp.sum(z, axis=0, keepdims=True) * inv_b          # [1, FPAD]
        msq = jnp.sum(z * z, axis=0, keepdims=True) * inv_b       # [1, FPAD]
        var = jnp.maximum(msq - mean * mean, 0.0)                 # biased var
        scale = jax.lax.rsqrt(var + EPS) * ph_ref[l, 1:2, :]      # rsqrt -> EUP
        shift = ph_ref[l, 2:3, :] - mean * scale
        h = z * scale + shift
        # Padded channels: z==0 everywhere -> mean=var=0, gamma pad=0 -> scale=0,
        # beta pad=0 -> shift=0 -> h stays exactly 0 (no leakage into next layer).

    out = jnp.dot(h.astype(jnp.bfloat16), wo_ref[...],
                  preferred_element_type=jnp.float32) + po_ref[0:1, :]
    o_ref[...] = out.astype(o_ref.dtype)


def _pad2(a, rows, cols):
    r, c = a.shape
    return jnp.pad(a, ((0, rows - r), (0, cols - c)))


def pack_mlp_params(hidden_ws, hidden_bs, gammas, betas, w_out, b_out):
    """One-time (init) packing: pad, stack, cast. Reused on every forward call."""
    wh = jnp.stack([_pad2(w, FPAD, FPAD) for w in hidden_ws]).astype(jnp.bfloat16)
    ph = jnp.stack([
        jnp.concatenate(
            [_pad2(bi.reshape(1, -1), 1, FPAD),
             _pad2(g.reshape(1, -1), 1, FPAD),
             _pad2(bt.reshape(1, -1), 1, FPAD),
             jnp.zeros((5, FPAD), jnp.float32)],
            axis=0)
        for bi, g, bt in zip(hidden_bs, gammas, betas)
    ]).astype(jnp.float32)                                         # [L, 8, FPAD]
    wo = _pad2(w_out, FPAD, FPAD).astype(jnp.bfloat16)
    po = _pad2(b_out.reshape(1, -1), 8, FPAD).astype(jnp.float32)
    return jax.block_until_ready((wh, ph, wo, po))


@functools.partial(jax.jit, static_argnames=("n_tasks",))
def mlp_predictor(feats, wh, ph, wo, po, *, n_tasks):
    """feats:[B,F_IN] (unpadded); packed params from pack_mlp_params -> [B,n_tasks]."""
    b = feats.shape[0]

    full = lambda shp: pl.BlockSpec(shp, memory_space=pltpu.MemorySpace.VMEM)

    # Explicit VMEM budget: all resident buffers (x2 headroom) + 4 MiB slack.
    vmem_bytes = 2 * int(
        feats.size * feats.dtype.itemsize
        + wh.size * 2 + ph.size * 4 + wo.size * 2 + po.size * 4
        + 2 * b * FPAD * 4                      # output block + scratch
    ) + (4 << 20)

    out_p = pl.pallas_call(
        mlp_predictor_kernel,
        out_shape=jax.ShapeDtypeStruct((b, FPAD), jnp.float32),
        in_specs=[full(feats.shape), full(wh.shape), full(ph.shape),
                  full(wo.shape), full(po.shape)],
        out_specs=full((b, FPAD)),
        scratch_shapes=[pltpu.VMEM((b, FPAD), jnp.float32)],
        compiler_params=pltpu.CompilerParams(vmem_limit_bytes=vmem_bytes),
    )(feats, wh, ph, wo, po)
    return out_p[:, :n_tasks]


def reference(feats, hidden_ws, hidden_bs, gammas, betas, w_out, b_out):
    """Pure-JAX reference mirroring the kernel's bf16-matmul / f32-BN numerics."""
    h = feats
    for w, bi, g, bt in zip(hidden_ws, hidden_bs, gammas, betas):
        z = jnp.dot(h.astype(jnp.bfloat16), w.astype(jnp.bfloat16),
                    preferred_element_type=jnp.float32) + bi
        z = jnp.maximum(z, 0.0)
        mean = jnp.mean(z, axis=0, keepdims=True)
        var = jnp.mean((z - mean) ** 2, axis=0, keepdims=True)
        h = (z - mean) * jax.lax.rsqrt(var + EPS) * g + bt
    return jnp.dot(h.astype(jnp.bfloat16), w_out.astype(jnp.bfloat16),
                   preferred_element_type=jnp.float32) + b_out


if __name__ == "__main__":
    key = jax.random.PRNGKey(0)
    B, F_IN = 64, 16
    HIDDEN = [32, 64]
    N_TASKS = 8

    ks = list(jax.random.split(key, 3 + 4 * len(HIDDEN)))
    feats = jax.random.normal(ks[0], (B, F_IN), dtype=jnp.float32)

    hidden_ws, hidden_bs, gammas, betas = [], [], [], []
    fin, idx = F_IN, 1
    for hdim in HIDDEN:
        hidden_ws.append(jax.random.normal(ks[idx], (fin, hdim), dtype=jnp.float32) * 0.1); idx += 1
        hidden_bs.append(jax.random.normal(ks[idx], (1, hdim), dtype=jnp.float32) * 0.01); idx += 1
        gammas.append(1.0 + 0.1 * jax.random.normal(ks[idx], (1, hdim), dtype=jnp.float32)); idx += 1
        betas.append(0.1 * jax.random.normal(ks[idx], (1, hdim), dtype=jnp.float32)); idx += 1
        fin = hdim
    w_out = jax.random.normal(ks[idx], (fin, N_TASKS), dtype=jnp.float32) * 0.1; idx += 1
    b_out = jax.random.normal(ks[idx], (1, N_TASKS), dtype=jnp.float32) * 0.01

    # One-time init-style packing (hoisted out of the forward path).
    wh, ph, wo, po = pack_mlp_params(hidden_ws, hidden_bs, gammas, betas, w_out, b_out)

    out = mlp_predictor(feats, wh, ph, wo, po, n_tasks=N_TASKS)
    out = jax.block_until_ready(out)

    ref = reference(feats, hidden_ws, hidden_bs, gammas, betas, w_out, b_out)
    assert out.shape == (B, N_TASKS)
    assert jnp.allclose(out, ref, atol=2e-3, rtol=2e-3), "mismatch vs JAX reference"

    print("KERNEL_OK")
</pallas_src>

<mosaic_0001>
module attributes {stable_mosaic.version = 11 : i64} {
  func.func @mlp_predictor_kernel(%arg0: memref<64x16xf32, #tpu.memory_space<vmem>>, %arg1: memref<2x128x128xbf16, #tpu.memory_space<vmem>>, %arg2: memref<2x8x128xf32, #tpu.memory_space<vmem>>, %arg3: memref<128x128xbf16, #tpu.memory_space<vmem>>, %arg4: memref<8x128xf32, #tpu.memory_space<vmem>>, %arg5: memref<64x128xf32, #tpu.memory_space<vmem>>, %arg6: memref<64x128xf32, #tpu.memory_space<vmem>>) attributes {dimension_semantics = [], scalar_prefetch = 0 : i64, scratch_operands = 1 : i64, tpu.core_type = #tpu.core_type<tc>} {
    %cst = arith.constant 0.000000e+00 : f32
    %0 = vector.broadcast %cst : f32 to vector<64x128xf32>
    %c0 = arith.constant 0 : index
    %c0_0 = arith.constant 0 : index
    %1 = vector.load %arg6[%c0, %c0_0] : memref<64x128xf32, #tpu.memory_space<vmem>>, vector<64x128xf32>
    tpu.vector_store %arg6[%c0, %c0_0], %0 {strides = array<i32>} : memref<64x128xf32, #tpu.memory_space<vmem>>, vector<64x128xf32>,
    %c0_1 = arith.constant 0 : index
    %c0_2 = arith.constant 0 : index
    %2 = vector.load %arg0[%c0_1, %c0_2] : memref<64x16xf32, #tpu.memory_space<vmem>>, vector<64x16xf32>
    %c0_3 = arith.constant 0 : index
    %c0_4 = arith.constant 0 : index
    %3 = vector.load %arg6[%c0_3, %c0_4] : memref<64x128xf32, #tpu.memory_space<vmem>>, vector<64x16xf32>
    tpu.vector_store %arg6[%c0_3, %c0_4], %2 {strides = array<i32>} : memref<64x128xf32, #tpu.memory_space<vmem>>, vector<64x16xf32>,
    %c0_5 = arith.constant 0 : index
    %c0_6 = arith.constant 0 : index
    %4 = vector.load %arg6[%c0_5, %c0_6] : memref<64x128xf32, #tpu.memory_space<vmem>>, vector<64x128xf32>
    %5 = arith.truncf %4 : vector<64x128xf32> to vector<64x128xbf16>
    %c0_7 = arith.constant 0 : index
    %c0_8 = arith.constant 0 : index
    %c0_9 = arith.constant 0 : index
    %6 = vector.load %arg1[%c0_7, %c0_8, %c0_9] : memref<2x128x128xbf16, #tpu.memory_space<vmem>>, vector<1x128x128xbf16>
    %7 = vector.shape_cast %6 : vector<1x128x128xbf16> to vector<128x128xbf16>
    %cst_10 = arith.constant dense<0.000000e+00> : vector<64x128xf32>
    %8 = tpu.matmul %5, %7, %cst_10 {dimension_numbers = #tpu.dot_dimension_numbers<[1], [0], [0], [1], [0, 0, 1, 1], [], []>} : vector<64x128xbf16>, vector<128x128xbf16>, vector<64x128xf32> -> vector<64x128xf32>
    %c0_11 = arith.constant 0 : index
    %c0_12 = arith.constant 0 : index
    %c0_13 = arith.constant 0 : index
    %9 = vector.load %arg2[%c0_11, %c0_12, %c0_13] : memref<2x8x128xf32, #tpu.memory_space<vmem>>, vector<1x1x128xf32>
    %10 = vector.shape_cast %9 : vector<1x1x128xf32> to vector<1x128xf32>
    %11 = vector.broadcast %10 : vector<1x128xf32> to vector<64x128xf32>
    %12 = arith.addf %8, %11 : vector<64x128xf32>
    %cst_14 = arith.constant 0.000000e+00 : f32
    %13 = vector.broadcast %cst_14 : f32 to vector<64x128xf32>
    %14 = arith.maximumf %12, %13 : vector<64x128xf32>
    %cst_15 = arith.constant dense<0.000000e+00> : vector<128xf32>
    %15 = vector.multi_reduction <add>, %14, %cst_15 [0] : vector<64x128xf32> to vector<128xf32>
    %16 = vector.shape_cast %15 : vector<128xf32> to vector<1x128xf32>
    %cst_16 = arith.constant 1.562500e-02 : f32
    %17 = vector.broadcast %cst_16 : f32 to vector<1x128xf32>
    %18 = arith.mulf %16, %17 : vector<1x128xf32>
    %19 = arith.mulf %14, %14 : vector<64x128xf32>
    %cst_17 = arith.constant dense<0.000000e+00> : vector<128xf32>
    %20 = vector.multi_reduction <add>, %19, %cst_17 [0] : vector<64x128xf32> to vector<128xf32>
    %21 = vector.shape_cast %20 : vector<128xf32> to vector<1x128xf32>
    %cst_18 = arith.constant 1.562500e-02 : f32
    %22 = vector.broadcast %cst_18 : f32 to vector<1x128xf32>
    %23 = arith.mulf %21, %22 : vector<1x128xf32>
    %24 = arith.mulf %18, %18 : vector<1x128xf32>
    %25 = arith.subf %23, %24 : vector<1x128xf32>
    %cst_19 = arith.constant 0.000000e+00 : f32
    %26 = vector.broadcast %cst_19 : f32 to vector<1x128xf32>
    %27 = arith.maximumf %25, %26 : vector<1x128xf32>
    %cst_20 = arith.constant 9.99999974E-6 : f32
    %28 = vector.broadcast %cst_20 : f32 to vector<1x128xf32>
    %29 = arith.addf %27, %28 : vector<1x128xf32>
    %30 = math.rsqrt %29 : vector<1x128xf32>
    %c0_21 = arith.constant 0 : index
    %c1 = arith.constant 1 : index
    %c0_22 = arith.constant 0 : index
    %31 = vector.load %arg2[%c0_21, %c1, %c0_22] : memref<2x8x128xf32, #tpu.memory_space<vmem>>, vector<1x1x128xf32>
    %32 = vector.shape_cast %31 : vector<1x1x128xf32> to vector<1x128xf32>
    %33 = arith.mulf %30, %32 : vector<1x128xf32>
    %c0_23 = arith.constant 0 : index
    %c2 = arith.constant 2 : index
    %c0_24 = arith.constant 0 : index
    %34 = vector.load %arg2[%c0_23, %c2, %c0_24] : memref<2x8x128xf32, #tpu.memory_space<vmem>>, vector<1x1x128xf32>
    %35 = vector.shape_cast %34 : vector<1x1x128xf32> to vector<1x128xf32>
    %36 = arith.mulf %18, %33 : vector<1x128xf32>
    %37 = arith.subf %35, %36 : vector<1x128xf32>
    %38 = vector.broadcast %33 : vector<1x128xf32> to vector<64x128xf32>
    %39 = arith.mulf %14, %38 : vector<64x128xf32>
    %40 = vector.broadcast %37 : vector<1x128xf32> to vector<64x128xf32>
    %41 = arith.addf %39, %40 : vector<64x128xf32>
    %42 = arith.truncf %41 : vector<64x128xf32> to vector<64x128xbf16>
    %c1_25 = arith.constant 1 : index
    %c0_26 = arith.constant 0 : index
    %c0_27 = arith.constant 0 : index
    %43 = vector.load %arg1[%c1_25, %c0_26, %c0_27] : memref<2x128x128xbf16, #tpu.memory_space<vmem>>, vector<1x128x128xbf16>
    %44 = vector.shape_cast %43 : vector<1x128x128xbf16> to vector<128x128xbf16>
    %cst_28 = arith.constant dense<0.000000e+00> : vector<64x128xf32>
    %45 = tpu.matmul %42, %44, %cst_28 {dimension_numbers = #tpu.dot_dimension_numbers<[1], [0], [0], [1], [0, 0, 1, 1], [], []>} : vector<64x128xbf16>, vector<128x128xbf16>, vector<64x128xf32> -> vector<64x128xf32>
    %c1_29 = arith.constant 1 : index
    %c0_30 = arith.constant 0 : index
    %c0_31 = arith.constant 0 : index
    %46 = vector.load %arg2[%c1_29, %c0_30, %c0_31] : memref<2x8x128xf32, #tpu.memory_space<vmem>>, vector<1x1x128xf32>
    %47 = vector.shape_cast %46 : vector<1x1x128xf32> to vector<1x128xf32>
    %48 = vector.broadcast %47 : vector<1x128xf32> to vector<64x128xf32>
    %49 = arith.addf %45, %48 : vector<64x128xf32>
    %cst_32 = arith.constant 0.000000e+00 : f32
    %50 = vector.broadcast %cst_32 : f32 to vector<64x128xf32>
    %51 = arith.maximumf %49, %50 : vector<64x128xf32>
    %cst_33 = arith.constant dense<0.000000e+00> : vector<128xf32>
    %52 = vector.multi_reduction <add>, %51, %cst_33 [0] : vector<64x128xf32> to vector<128xf32>
    %53 = vector.shape_cast %52 : vector<128xf32> to vector<1x128xf32>
    %cst_34 = arith.constant 1.562500e-02 : f32
    %54 = vector.broadcast %cst_34 : f32 to vector<1x128xf32>
    %55 = arith.mulf %53, %54 : vector<1x128xf32>
    %56 = arith.mulf %51, %51 : vector<64x128xf32>
    %cst_35 = arith.constant dense<0.000000e+00> : vector<128xf32>
    %57 = vector.multi_reduction <add>, %56, %cst_35 [0] : vector<64x128xf32> to vector<128xf32>
    %58 = vector.shape_cast %57 : vector<128xf32> to vector<1x128xf32>
    %cst_36 = arith.constant 1.562500e-02 : f32
    %59 = vector.broadcast %cst_36 : f32 to vector<1x128xf32>
    %60 = arith.mulf %58, %59 : vector<1x128xf32>
    %61 = arith.mulf %55, %55 : vector<1x128xf32>
    %62 = arith.subf %60, %61 : vector<1x128xf32>
    %cst_37 = arith.constant 0.000000e+00 : f32
    %63 = vector.broadcast %cst_37 : f32 to vector<1x128xf32>
    %64 = arith.maximumf %62, %63 : vector<1x128xf32>
    %cst_38 = arith.constant 9.99999974E-6 : f32
    %65 = vector.broadcast %cst_38 : f32 to vector<1x128xf32>
    %66 = arith.addf %64, %65 : vector<1x128xf32>
    %67 = math.rsqrt %66 : vector<1x128xf32>
    %c1_39 = arith.constant 1 : index
    %c1_40 = arith.constant 1 : index
    %c0_41 = arith.constant 0 : index
    %68 = vector.load %arg2[%c1_39, %c1_40, %c0_41] : memref<2x8x128xf32, #tpu.memory_space<vmem>>, vector<1x1x128xf32>
    %69 = vector.shape_cast %68 : vector<1x1x128xf32> to vector<1x128xf32>
    %70 = arith.mulf %67, %69 : vector<1x128xf32>
    %c1_42 = arith.constant 1 : index
    %c2_43 = arith.constant 2 : index
    %c0_44 = arith.constant 0 : index
    %71 = vector.load %arg2[%c1_42, %c2_43, %c0_44] : memref<2x8x128xf32, #tpu.memory_space<vmem>>, vector<1x1x128xf32>
    %72 = vector.shape_cast %71 : vector<1x1x128xf32> to vector<1x128xf32>
    %73 = arith.mulf %55, %70 : vector<1x128xf32>
    %74 = arith.subf %72, %73 : vector<1x128xf32>
    %75 = vector.broadcast %70 : vector<1x128xf32> to vector<64x128xf32>
    %76 = arith.mulf %51, %75 : vector<64x128xf32>
    %77 = vector.broadcast %74 : vector<1x128xf32> to vector<64x128xf32>
    %78 = arith.addf %76, %77 : vector<64x128xf32>
    %79 = arith.truncf %78 : vector<64x128xf32> to vector<64x128xbf16>
    %c0_45 = arith.constant 0 : index
    %c0_46 = arith.constant 0 : index
    %80 = vector.load %arg3[%c0_45, %c0_46] : memref<128x128xbf16, #tpu.memory_space<vmem>>, vector<128x128xbf16>
    %cst_47 = arith.constant dense<0.000000e+00> : vector<64x128xf32>
    %81 = tpu.matmul %79, %80, %cst_47 {dimension_numbers = #tpu.dot_dimension_numbers<[1], [0], [0], [1], [0, 0, 1, 1], [], []>} : vector<64x128xbf16>, vector<128x128xbf16>, vector<64x128xf32> -> vector<64x128xf32>
    %c0_48 = arith.constant 0 : index
    %c0_49 = arith.constant 0 : index
    %82 = vector.load %arg4[%c0_48, %c0_49] : memref<8x128xf32, #tpu.memory_space<vmem>>, vector<1x128xf32>
    %83 = vector.broadcast %82 : vector<1x128xf32> to vector<64x128xf32>
    %84 = arith.addf %81, %83 : vector<64x128xf32>
    %c0_50 = arith.constant 0 : index
    %c0_51 = arith.constant 0 : index
    %85 = vector.load %arg5[%c0_50, %c0_51] : memref<64x128xf32, #tpu.memory_space<vmem>>, vector<64x128xf32>
    tpu.vector_store %arg5[%c0_50, %c0_51], %84 {strides = array<i32>} : memref<64x128xf32, #tpu.memory_space<vmem>>, vector<64x128xf32>,
    return
  }
}

</mosaic_0001>

<llo_original>
// kernel: mlp_predictor.1
$region0: #{mlp_predictor.1}
  #allocation0 [shape = 'u32[]', space=smem, size = 0x4, offset = 0x4, fixed_abs, tag = 'smem constant byte address 0x4 - core index']
  #allocation1 [shape = 'u32[144,128]{1,0:T(1,128)}', space=vmem, size = 0x12000, scoped, tag = 'internal scratch']
  #allocation2 [shape = 'f32[64,128]{1,0:T(8,128)}', space=vmem, size = 0x8000, scoped, tag = 'scratch operand']
  %s0 = inlined_call_operand.vmem [shape: f32[64,16], index: 0, kind: input, shape index: {}]
  %s1 = inlined_call_operand.hbm [shape: bf16[2,128,128], index: 1, kind: input, shape index: {}]
  %s2 = inlined_call_operand.vmem [shape: f32[2,8,128], index: 2, kind: input, shape index: {}]
  %s3 = inlined_call_operand.vmem [shape: bf16[128,128], index: 3, kind: input, shape index: {}]
  %s4 = inlined_call_operand.vmem [shape: f32[8,128], index: 4, kind: input, shape index: {}]
  %s5 = inlined_call_operand.vmem [shape: f32[64,128], index: 5, kind: output, shape index: {}]
  %s6 = sld [smem:[#allocation0]]
  $region34: #{mlp_predictor.1} parent=0
    _
  %s8 = ssub.s32 1, %s6
  %s9 = scalar_select 0, %s8, %s6
  $region1: #{mlp_predictor.1} parent=0
    #allocation3 [shape = 'u8[65536]{0}', space=vmem, size = 0x10000, scoped, tag = 'input window, operand 1, single buffered']
    #allocation4 [shape = 's32[1]{0}', space=sflag, size = 0x4, scoped, tag = 'scoped memory for mlp_predictor.1']
    %10 = vsyncpa [#allocation4], 0
    // Predicated region
    $region2: #{mlp_predictor.1} parent=1 // pred_check
      _
    $region3: #{mlp_predictor.1} parent=1 // pred_check_branch
      %12 = sbr.rel (0) target = $region5
    $region4: #{mlp_predictor.1} parent=1 // pred_region
      _
    $region5: #{mlp_predictor.1} parent=1 // pred_fallthru
      _
    // Predicated region
    $region6: #{mlp_predictor.1} parent=1 // pred_check
      _
    $region7: #{mlp_predictor.1} parent=1 // pred_check_branch
      %14 = sbr.rel (0) target = $region9
    $region8: #{mlp_predictor.1} parent=1 // pred_region
      %s16 = ssub.s32 2048, 2048
      %17 = vsyncadd [#allocation4], %s16
      %s18 = sshll.u32 [#allocation3], 4
      %s19 = int_to_ptr.vmem [resolvable:$true] %s18
      %24 = dma.hbm_to_vmem [thread:$0]  %s1, 2048, %s19, [#allocation4], 64, 64, 4
    $region9: #{mlp_predictor.1} parent=1 // pred_fallthru
      _
    // Predicated region
    $region10: #{mlp_predictor.1} parent=1 // pred_check
      _
    $region11: #{mlp_predictor.1} parent=1 // pred_check_branch
      %26 = sbr.rel (0) target = $region13
    $region12: #{mlp_predictor.1} parent=1 // pred_region
      _
    $region13: #{mlp_predictor.1} parent=1 // pred_fallthru
      _
    // Predicated region
    $region14: #{mlp_predictor.1} parent=1 // pred_check
      _
    $region15: #{mlp_predictor.1} parent=1 // pred_check_branch
      %28 = sbr.rel (0) target = $region17
    $region16: #{mlp_predictor.1} parent=1 // pred_region
      _
    $region17: #{mlp_predictor.1} parent=1 // pred_fallthru
      _
    // Predicated region
    $region18: #{mlp_predictor.1} parent=1 // pred_check
      _
    $region19: #{mlp_predictor.1} parent=1 // pred_check_branch
      %30 = sbr.rel (0) target = $region21
    $region20: #{mlp_predictor.1} parent=1 // pred_region
      _
    $region21: #{mlp_predictor.1} parent=1 // pred_fallthru
      _
    // Predicated region
    $region22: #{mlp_predictor.1} parent=1 // pred_check
      _
    $region23: #{mlp_predictor.1} parent=1 // pred_check_branch
      %32 = sbr.rel (0) target = $region25
    $region24: #{mlp_predictor.1} parent=1 // pred_region
      %33 = dma.done [#allocation4], 2048
    $region25: #{mlp_predictor.1} parent=1 // pred_fallthru
      _
    %35 = vst [vmem:[#allocation2] sm:$0xff] 0.0
    %36 = vst [vmem:[#allocation2 + $0x8] sm:$0xff] 0.0
    %37 = vst [vmem:[#allocation2 + $0x10] sm:$0xff] 0.0
    %38 = vst [vmem:[#allocation2 + $0x18] sm:$0xff] 0.0
    %39 = vst [vmem:[#allocation2 + $0x20] sm:$0xff] 0.0
    %40 = vst [vmem:[#allocation2 + $0x28] sm:$0xff] 0.0
    %41 = vst [vmem:[#allocation2 + $0x30] sm:$0xff] 0.0
    %42 = vst [vmem:[#allocation2 + $0x38] sm:$0xff] 0.0
    %v43 = vld [vmem:[%s0] sm:$0xff]
    %v44 = vld [vmem:[%s0 + $0x8] sm:$0xff]
    %v45 = vld [vmem:[%s0 + $0x10] sm:$0xff]
    %v46 = vld [vmem:[%s0 + $0x18] sm:$0xff]
    %v47 = vld [vmem:[%s0 + $0x20] sm:$0xff]
    %v48 = vld [vmem:[%s0 + $0x28] sm:$0xff]
    %v49 = vld [vmem:[%s0 + $0x30] sm:$0xff]
    %v50 = vld [vmem:[%s0 + $0x38] sm:$0xff]
    %vm51 = vcmask 130048
    %52 = vst.msk [vmem:[#allocation2] sm:$0xff] %vm51, %v43
    %53 = vst.msk [vmem:[#allocation2 + $0x8] sm:$0xff] %vm51, %v44
    %54 = vst.msk [vmem:[#allocation2 + $0x10] sm:$0xff] %vm51, %v45
    %55 = vst.msk [vmem:[#allocation2 + $0x18] sm:$0xff] %vm51, %v46
    %56 = vst.msk [vmem:[#allocation2 + $0x20] sm:$0xff] %vm51, %v47
    %57 = vst.msk [vmem:[#allocation2 + $0x28] sm:$0xff] %vm51, %v48
    %58 = vst.msk [vmem:[#allocation2 + $0x30] sm:$0xff] %vm51, %v49
    %59 = vst.msk [vmem:[#allocation2 + $0x38] sm:$0xff] %vm51, %v50
    %v60 = vld [vmem:[#allocation2] sm:$0xff]
    %v61 = vld [vmem:[#allocation2 + $0x8] sm:$0xff]
    %v62 = vld [vmem:[#allocation2 + $0x10] sm:$0xff]
    %v63 = vld [vmem:[#allocation2 + $0x18] sm:$0xff]
    %v64 = vld [vmem:[#allocation2 + $0x20] sm:$0xff]
    %v65 = vld [vmem:[#allocation2 + $0x28] sm:$0xff]
    %v66 = vld [vmem:[#allocation2 + $0x30] sm:$0xff]
    %v67 = vld [vmem:[#allocation2 + $0x38] sm:$0xff]
    %v68 = vpack.c.bf16 %v61, %v60
    %v69 = vpack.c.bf16 %v63, %v62
    %v70 = vpack.c.bf16 %v65, %v64
    %v71 = vpack.c.bf16 %v67, %v66
    %v72 = vld [vmem:[#allocation3] sm:$0xf]
    %v73 = vld [vmem:[#allocation3 + $0x4] sm:$0xf]
    %v74 = vld [vmem:[#allocation3 + $0x8] sm:$0xf]
    %v75 = vld [vmem:[#allocation3 + $0xc] sm:$0xf]
    %v76 = vld [vmem:[#allocation3 + $0x10] sm:$0xf]
    %v77 = vld [vmem:[#allocation3 + $0x14] sm:$0xf]
    %v78 = vld [vmem:[#allocation3 + $0x18] sm:$0xf]
    %v79 = vld [vmem:[#allocation3 + $0x1c] sm:$0xf]
    %v80 = vld [vmem:[#allocation3 + $0x20] sm:$0xf]
    %v81 = vld [vmem:[#allocation3 + $0x24] sm:$0xf]
    %v82 = vld [vmem:[#allocation3 + $0x28] sm:$0xf]
    %v83 = vld [vmem:[#allocation3 + $0x2c] sm:$0xf]
    %v84 = vld [vmem:[#allocation3 + $0x30] sm:$0xf]
    %v85 = vld [vmem:[#allocation3 + $0x34] sm:$0xf]
    %v86 = vld [vmem:[#allocation3 + $0x38] sm:$0xf]
    %v87 = vld [vmem:[#allocation3 + $0x3c] sm:$0xf]
    %v88 = vld [vmem:[%s2] sm:$0x1]
    %v89 = vlaneseq
    %v90 = vshrl.u32 %v89, 7
    %v91 = vsub.s32 0, %v90
    %v92 = vrot.slane %v88, %v91
    %v109 = vunpack.c.l.b16 %v72
    %v110 = vunpack.c.l.b16 %v73
    %v111 = vunpack.c.l.b16 %v74
    %v112 = vunpack.c.l.b16 %v75
    %v113 = vunpack.c.l.b16 %v76
    %v114 = vunpack.c.l.b16 %v77
    %v115 = vunpack.c.l.b16 %v78
    %v116 = vunpack.c.l.b16 %v79
    %v117 = vunpack.c.l.b16 %v80
    %v118 = vunpack.c.l.b16 %v81
    %v119 = vunpack.c.l.b16 %v82
    %v120 = vunpack.c.l.b16 %v83
    %v121 = vunpack.c.l.b16 %v84
    %v122 = vunpack.c.l.b16 %v85
    %v123 = vunpack.c.l.b16 %v86
    %v124 = vunpack.c.l.b16 %v87
    %v125 = vpack.c.b16 %v110, %v109
    %v126 = vpack.c.b16 %v112, %v111
    %v127 = vpack.c.b16 %v114, %v113
    %v128 = vpack.c.b16 %v116, %v115
    %v129 = vpack.c.b16 %v118, %v117
    %v130 = vpack.c.b16 %v120, %v119
    %v131 = vpack.c.b16 %v122, %v121
    %v132 = vpack.c.b16 %v124, %v123
    %141 = vmatprep.subr.bf16.mxu0 0
    %142 = vmatpush1.bf16.msra.mxu0 %v125
    %143 = vmatprep.subr.bf16.mxu0 0
    %144 = vmatpush1.bf16.msra.mxu0 %v126
    %145 = vmatprep.subr.bf16.mxu0 0
    %146 = vmatpush1.bf16.msra.mxu0 %v127
    %147 = vmatprep.subr.bf16.mxu0 0
    %148 = vmatpush1.bf16.msra.mxu0 %v128
    %149 = vmatprep.subr.bf16.mxu0 0
    %150 = vmatpush1.bf16.msra.mxu0 %v129
    %151 = vmatprep.subr.bf16.mxu0 0
    %152 = vmatpush1.bf16.msra.mxu0 %v130
    %153 = vmatprep.subr.bf16.mxu0 0
    %154 = vmatpush1.bf16.msra.mxu0 %v131
    %155 = vmatprep.subr.bf16.mxu0 0
    %156 = vmatpush1.bf16.msra.mxu0 %v132
    %157 = vmatprep.subr.bf16.mxu0 0
    %158 = vmatpush1.bf16.msra.mxu0 0
    %159 = vmatprep.subr.bf16.mxu0 0
    %160 = vmatpush1.bf16.msra.mxu0 0
    %161 = vmatprep.subr.bf16.mxu0 0
    %162 = vmatpush1.bf16.msra.mxu0 0
    %163 = vmatprep.subr.bf16.mxu0 0
    %164 = vmatpush1.bf16.msra.mxu0 0
    %165 = vmatprep.subr.bf16.mxu0 0
    %166 = vmatpush1.bf16.msra.mxu0 0
    %167 = vmatprep.subr.bf16.mxu0 0
    %168 = vmatpush1.bf16.msra.mxu0 0
    %169 = vmatprep.subr.bf16.mxu0 0
    %170 = vmatpush1.bf16.msra.mxu0 0
    %171 = vmatprep.subr.bf16.mxu0 0
    %172 = vmatpush1.bf16.msra.mxu0 0
    %173 = vmatprep.mubr.bf16.mxu0 0
    %174 = vmatmul.mubr.bf16.gmra.mrb[0].mxu0 %v68
    %v175 = vpop.f32.mrb[0].mxu0
    %v176 = vadd.f32 %v92, %v175
    %v177 = vpop.f32.mrb[0].mxu0
    %v178 = vpop.f32.mrb[0].mxu0
    %v179 = vadd.f32 %v92, %v178
    %v180 = vpop.f32.mrb[0].mxu0
    %181 = vmatprep.mubr.bf16.mxu0 0
    %182 = vmatmul.mubr.bf16.gmra.mrb[0].mxu0 %v69
    %v183 = vpop.f32.mrb[0].mxu0
    %v184 = vadd.f32 %v92, %v183
    %v185 = vpop.f32.mrb[0].mxu0
    %v186 = vpop.f32.mrb[0].mxu0
    %v187 = vadd.f32 %v92, %v186
    %v188 = vpop.f32.mrb[0].mxu0
    %189 = vmatprep.mubr.bf16.mxu0 0
    %190 = vmatmul.mubr.bf16.gmra.mrb[0].mxu0 %v70
    %v191 = vpop.f32.mrb[0].mxu0
    %v192 = vadd.f32 %v92, %v191
    %v193 = vpop.f32.mrb[0].mxu0
    %v194 = vpop.f32.mrb[0].mxu0
    %v195 = vadd.f32 %v92, %v194
    %v196 = vpop.f32.mrb[0].mxu0
    %197 = vmatprep.mubr.bf16.mxu0 0
    %198 = vmatmul.mubr.bf16.gmra.mrb[0].mxu0 %v71
    %v199 = vpop.f32.mrb[0].mxu0
    %v200 = vadd.f32 %v92, %v199
    %v201 = vpop.f32.mrb[0].mxu0
    %v202 = vpop.f32.mrb[0].mxu0
    %v203 = vadd.f32 %v92, %v202
    %v204 = vpop.f32.mrb[0].mxu0
    %205 = vdwg.mxu0
    %v206 = vmax.f32 %v176, 0.0
    %v207 = vmax.f32 %v179, 0.0
    %v208 = vmax.f32 %v184, 0.0
    %v209 = vmax.f32 %v187, 0.0
    %v210 = vmax.f32 %v192, 0.0
    %v211 = vmax.f32 %v195, 0.0
    %v212 = vmax.f32 %v200, 0.0
    %v213 = vmax.f32 %v203, 0.0
    %v214 = vadd.f32 %v206, %v207
    %v215 = vadd.f32 %v214, %v208
    %v216 = vadd.f32 %v215, %v209
    %v217 = vadd.f32 %v216, %v210
    %v218 = vadd.f32 %v217, %v211
    %v219 = vadd.f32 %v218, %v212
    %v220 = vadd.f32 %v219, %v213
    %v221 = vrot.slane %v220, 4
    %v222 = vadd.f32 %v220, %v221
    %v223 = vrot.slane %v222, 2
    %v224 = vadd.f32 %v222, %v223
    %v225 = vrot.slane %v224, 1
    %v226 = vadd.f32 %v224, %v225
    %v227 = vmul.f32 %v226, 0.015625
    %v228 = vmul.f32 %v206, %v206
    %v229 = vmul.f32 %v207, %v207
    %v230 = vmul.f32 %v208, %v208
    %v231 = vmul.f32 %v209, %v209
    %v232 = vmul.f32 %v210, %v210
    %v233 = vmul.f32 %v211, %v211
    %v234 = vmul.f32 %v212, %v212
    %v235 = vmul.f32 %v213, %v213
    %v236 = vadd.f32 %v228, %v229
    %v237 = vadd.f32 %v236, %v230
    %v238 = vadd.f32 %v237, %v231
    %v239 = vadd.f32 %v238, %v232
    %v240 = vadd.f32 %v239, %v233
    %v241 = vadd.f32 %v240, %v234
    %v242 = vadd.f32 %v241, %v235
    %v243 = vrot.slane %v242, 4
    %v244 = vadd.f32 %v242, %v243
    %v245 = vrot.slane %v244, 2
    %v246 = vadd.f32 %v244, %v245
    %v247 = vrot.slane %v246, 1
    %v248 = vadd.f32 %v246, %v247
    %v249 = vmul.f32 %v248, 0.015625
    %v250 = vmul.f32 %v227, %v227
    %v251 = vsub.f32 %v249, %v250
    %v252 = vmax.f32 %v251, 0.0
    %v253 = vadd.f32 %v252, 1e-05
    %v254 = vrsqrt.pop %v253
    %v255 = vld [vmem:[%s2 + $0x1] sm:$0x1]
    %v256 = vmul.f32 %v254, %v255
    %v257 = vld [vmem:[%s2 + $0x2] sm:$0x1]
    %v258 = vmul.f32 %v227, %v256
    %v259 = vsub.f32 %v257, %v258
    %v260 = vlaneseq
    %v261 = vshrl.u32 %v260, 7
    %v262 = vsub.s32 0, %v261
    %v263 = vrot.slane %v256, %v262
    %v264 = vmul.f32 %v206, %v263
    %v265 = vmul.f32 %v207, %v263
    %v266 = vmul.f32 %v208, %v263
    %v267 = vmul.f32 %v209, %v263
    %v268 = vmul.f32 %v210, %v263
    %v269 = vmul.f32 %v211, %v263
    %v270 = vmul.f32 %v212, %v263
    %v271 = vmul.f32 %v213, %v263
    %v272 = vlaneseq
    %v273 = vshrl.u32 %v272, 7
    %v274 = vsub.s32 0, %v273
    %v275 = vrot.slane %v259, %v274
    %v276 = vadd.f32 %v264, %v275
    %v277 = vadd.f32 %v265, %v275
    %v278 = vadd.f32 %v266, %v275
    %v279 = vadd.f32 %v267, %v275
    %v280 = vadd.f32 %v268, %v275
    %v281 = vadd.f32 %v269, %v275
    %v282 = vadd.f32 %v270, %v275
    %v283 = vadd.f32 %v271, %v275
    %v284 = vpack.c.bf16 %v277, %v276
    %v285 = vpack.c.bf16 %v279, %v278
    %v286 = vpack.c.bf16 %v281, %v280
    %v287 = vpack.c.bf16 %v283, %v282
    %s288 = scalar_lea.vmem [#allocation3], 64
    %v289 = vld [vmem:[%s288] sm:$0xf]
    %v290 = vld [vmem:[%s288 + $0x4] sm:$0xf]
    %v291 = vld [vmem:[%s288 + $0x8] sm:$0xf]
    %v292 = vld [vmem:[%s288 + $0xc] sm:$0xf]
    %v293 = vld [vmem:[%s288 + $0x10] sm:$0xf]
    %v294 = vld [vmem:[%s288 + $0x14] sm:$0xf]
    %v295 = vld [vmem:[%s288 + $0x18] sm:$0xf]
    %v296 = vld [vmem:[%s288 + $0x1c] sm:$0xf]
    %v297 = vld [vmem:[%s288 + $0x20] sm:$0xf]
    %v298 = vld [vmem:[%s288 + $0x24] sm:$0xf]
    %v299 = vld [vmem:[%s288 + $0x28] sm:$0xf]
    %v300 = vld [vmem:[%s288 + $0x2c] sm:$0xf]
    %v301 = vld [vmem:[%s288 + $0x30] sm:$0xf]
    %v302 = vld [vmem:[%s288 + $0x34] sm:$0xf]
    %v303 = vld [vmem:[%s288 + $0x38] sm:$0xf]
    %v304 = vld [vmem:[%s288 + $0x3c] sm:$0xf]
    %s305 = scalar_lea.vmem %s2, 8
    %v306 = vld [vmem:[%s305] sm:$0x1]
    %v307 = vlaneseq
    %v308 = vshrl.u32 %v307, 7
    %v309 = vsub.s32 0, %v308
    %v310 = vrot.slane %v306, %v309
    %v327 = vunpack.c.l.b16 %v289
    %v328 = vunpack.c.l.b16 %v290
    %v329 = vunpack.c.l.b16 %v291
    %v330 = vunpack.c.l.b16 %v292
    %v331 = vunpack.c.l.b16 %v293
    %v332 = vunpack.c.l.b16 %v294
    %v333 = vunpack.c.l.b16 %v295
    %v334 = vunpack.c.l.b16 %v296
    %v335 = vunpack.c.l.b16 %v297
    %v336 = vunpack.c.l.b16 %v298
    %v337 = vunpack.c.l.b16 %v299
    %v338 = vunpack.c.l.b16 %v300
    %v339 = vunpack.c.l.b16 %v301
    %v340 = vunpack.c.l.b16 %v302
    %v341 = vunpack.c.l.b16 %v303
    %v342 = vunpack.c.l.b16 %v304
    %v343 = vpack.c.b16 %v328, %v327
    %v344 = vpack.c.b16 %v330, %v329
    %v345 = vpack.c.b16 %v332, %v331
    %v346 = vpack.c.b16 %v334, %v333
    %v347 = vpack.c.b16 %v336, %v335
    %v348 = vpack.c.b16 %v338, %v337
    %v349 = vpack.c.b16 %v340, %v339
    %v350 = vpack.c.b16 %v342, %v341
    %359 = vmatprep.subr.bf16.mxu0 0
    %360 = vmatpush1.bf16.msra.mxu0 %v343
    %361 = vmatprep.subr.bf16.mxu0 0
    %362 = vmatpush1.bf16.msra.mxu0 %v344
    %363 = vmatprep.subr.bf16.mxu0 0
    %364 = vmatpush1.bf16.msra.mxu0 %v345
    %365 = vmatprep.subr.bf16.mxu0 0
    %366 = vmatpush1.bf16.msra.mxu0 %v346
    %367 = vmatprep.subr.bf16.mxu0 0
    %368 = vmatpush1.bf16.msra.mxu0 %v347
    %369 = vmatprep.subr.bf16.mxu0 0
    %370 = vmatpush1.bf16.msra.mxu0 %v348
    %371 = vmatprep.subr.bf16.mxu0 0
    %372 = vmatpush1.bf16.msra.mxu0 %v349
    %373 = vmatprep.subr.bf16.mxu0 0
    %374 = vmatpush1.bf16.msra.mxu0 %v350
    %375 = vmatprep.subr.bf16.mxu0 0
    %376 = vmatpush1.bf16.msra.mxu0 0
    %377 = vmatprep.subr.bf16.mxu0 0
    %378 = vmatpush1.bf16.msra.mxu0 0
    %379 = vmatprep.subr.bf16.mxu0 0
    %380 = vmatpush1.bf16.msra.mxu0 0
    %381 = vmatprep.subr.bf16.mxu0 0
    %382 = vmatpush1.bf16.msra.mxu0 0
    %383 = vmatprep.subr.bf16.mxu0 0
    %384 = vmatpush1.bf16.msra.mxu0 0
    %385 = vmatprep.subr.bf16.mxu0 0
    %386 = vmatpush1.bf16.msra.mxu0 0
    %387 = vmatprep.subr.bf16.mxu0 0
    %388 = vmatpush1.bf16.msra.mxu0 0
    %389 = vmatprep.subr.bf16.mxu0 0
    %390 = vmatpush1.bf16.msra.mxu0 0
    %391 = vmatprep.mubr.bf16.mxu0 0
    %392 = vmatmul.mubr.bf16.gmra.mrb[0].mxu0 %v284
    %v393 = vpop.f32.mrb[0].mxu0
    %v394 = vadd.f32 %v310, %v393
    %v395 = vpop.f32.mrb[0].mxu0
    %v396 = vpop.f32.mrb[0].mxu0
    %v397 = vadd.f32 %v310, %v396
    %v398 = vpop.f32.mrb[0].mxu0
    %399 = vmatprep.mubr.bf16.mxu0 0
    %400 = vmatmul.mubr.bf16.gmra.mrb[0].mxu0 %v285
    %v401 = vpop.f32.mrb[0].mxu0
    %v402 = vadd.f32 %v310, %v401
    %v403 = vpop.f32.mrb[0].mxu0
    %v404 = vpop.f32.mrb[0].mxu0
    %v405 = vadd.f32 %v310, %v404
    %v406 = vpop.f32.mrb[0].mxu0
    %407 = vmatprep.mubr.bf16.mxu0 0
    %408 = vmatmul.mubr.bf16.gmra.mrb[0].mxu0 %v286
    %v409 = vpop.f32.mrb[0].mxu0
    %v410 = vadd.f32 %v310, %v409
    %v411 = vpop.f32.mrb[0].mxu0
    %v412 = vpop.f32.mrb[0].mxu0
    %v413 = vadd.f32 %v310, %v412
    %v414 = vpop.f32.mrb[0].mxu0
    %415 = vmatprep.mubr.bf16.mxu0 0
    %416 = vmatmul.mubr.bf16.gmra.mrb[0].mxu0 %v287
    %v417 = vpop.f32.mrb[0].mxu0
    %v418 = vadd.f32 %v310, %v417
    %v419 = vpop.f32.mrb[0].mxu0
    %v420 = vpop.f32.mrb[0].mxu0
    %v421 = vadd.f32 %v310, %v420
    %v422 = vpop.f32.mrb[0].mxu0
    %423 = vdwg.mxu0
    %v424 = vmax.f32 %v394, 0.0
    %v425 = vmax.f32 %v397, 0.0
    %v426 = vmax.f32 %v402, 0.0
    %v427 = vmax.f32 %v405, 0.0
    %v428 = vmax.f32 %v410, 0.0
    %v429 = vmax.f32 %v413, 0.0
    %v430 = vmax.f32 %v418, 0.0
    %v431 = vmax.f32 %v421, 0.0
    %v432 = vadd.f32 %v424, %v425
    %v433 = vadd.f32 %v432, %v426
    %v434 = vadd.f32 %v433, %v427
    %v435 = vadd.f32 %v434, %v428
    %v436 = vadd.f32 %v435, %v429
    %v437 = vadd.f32 %v436, %v430
    %v438 = vadd.f32 %v437, %v431
    %v439 = vrot.slane %v438, 4
    %v440 = vadd.f32 %v438, %v439
    %v441 = vrot.slane %v440, 2
    %v442 = vadd.f32 %v440, %v441
    %v443 = vrot.slane %v442, 1
    %v444 = vadd.f32 %v442, %v443
    %v445 = vmul.f32 %v444, 0.015625
    %v446 = vmul.f32 %v424, %v424
    %v447 = vmul.f32 %v425, %v425
    %v448 = vmul.f32 %v426, %v426
    %v449 = vmul.f32 %v427, %v427
    %v450 = vmul.f32 %v428, %v428
    %v451 = vmul.f32 %v429, %v429
    %v452 = vmul.f32 %v430, %v430
    %v453 = vmul.f32 %v431, %v431
    %v454 = vadd.f32 %v446, %v447
    %v455 = vadd.f32 %v454, %v448
    %v456 = vadd.f32 %v455, %v449
    %v457 = vadd.f32 %v456, %v450
    %v458 = vadd.f32 %v457, %v451
    %v459 = vadd.f32 %v458, %v452
    %v460 = vadd.f32 %v459, %v453
    %v461 = vrot.slane %v460, 4
    %v462 = vadd.f32 %v460, %v461
    %v463 = vrot.slane %v462, 2
    %v464 = vadd.f32 %v462, %v463
    %v465 = vrot.slane %v464, 1
    %v466 = vadd.f32 %v464, %v465
    %v467 = vmul.f32 %v466, 0.015625
    %v468 = vmul.f32 %v445, %v445
    %v469 = vsub.f32 %v467, %v468
    %v470 = vmax.f32 %v469, 0.0
    %v471 = vadd.f32 %v470, 1e-05
    %v472 = vrsqrt.pop %v471
    %v473 = vld [vmem:[%s305 + $0x1] sm:$0x1]
    %v474 = vmul.f32 %v472, %v473
    %v475 = vld [vmem:[%s305 + $0x2] sm:$0x1]
    %v476 = vmul.f32 %v445, %v474
    %v477 = vsub.f32 %v475, %v476
    %v478 = vlaneseq
    %v479 = vshrl.u32 %v478, 7
    %v480 = vsub.s32 0, %v479
    %v481 = vrot.slane %v474, %v480
    %v482 = vmul.f32 %v424, %v481
    %v483 = vmul.f32 %v425, %v481
    %v484 = vmul.f32 %v426, %v481
    %v485 = vmul.f32 %v427, %v481
    %v486 = vmul.f32 %v428, %v481
    %v487 = vmul.f32 %v429, %v481
    %v488 = vmul.f32 %v430, %v481
    %v489 = vmul.f32 %v431, %v481
    %v490 = vlaneseq
    %v491 = vshrl.u32 %v490, 7
    %v492 = vsub.s32 0, %v491
    %v493 = vrot.slane %v477, %v492
    %v494 = vadd.f32 %v482, %v493
    %v495 = vadd.f32 %v483, %v493
    %v496 = vadd.f32 %v484, %v493
    %v497 = vadd.f32 %v485, %v493
    %v498 = vadd.f32 %v486, %v493
    %v499 = vadd.f32 %v487, %v493
    %v500 = vadd.f32 %v488, %v493
    %v501 = vadd.f32 %v489, %v493
    %v502 = vpack.c.bf16 %v495, %v494
    %v503 = vpack.c.bf16 %v497, %v496
    %v504 = vpack.c.bf16 %v499, %v498
    %v505 = vpack.c.bf16 %v501, %v500
    %v506 = vld [vmem:[%s3] sm:$0xf]
    %v507 = vld [vmem:[%s3 + $0x4] sm:$0xf]
    %v508 = vld [vmem:[%s3 + $0x8] sm:$0xf]
    %v509 = vld [vmem:[%s3 + $0xc] sm:$0xf]
    %v510 = vld [vmem:[%s3 + $0x10] sm:$0xf]
    %v511 = vld [vmem:[%s3 + $0x14] sm:$0xf]
    %v512 = vld [vmem:[%s3 + $0x18] sm:$0xf]
    %v513 = vld [vmem:[%s3 + $0x1c] sm:$0xf]
    %v514 = vld [vmem:[%s3 + $0x20] sm:$0xf]
    %v515 = vld [vmem:[%s3 + $0x24] sm:$0xf]
    %v516 = vld [vmem:[%s3 + $0x28] sm:$0xf]
    %v517 = vld [vmem:[%s3 + $0x2c] sm:$0xf]
    %v518 = vld [vmem:[%s3 + $0x30] sm:$0xf]
    %v519 = vld [vmem:[%s3 + $0x34] sm:$0xf]
    %v520 = vld [vmem:[%s3 + $0x38] sm:$0xf]
    %v521 = vld [vmem:[%s3 + $0x3c] sm:$0xf]
    %v522 = vld [vmem:[%s4] sm:$0x1]
    %v523 = vlaneseq
    %v524 = vshrl.u32 %v523, 7
    %v525 = vsub.s32 0, %v524
    %v526 = vrot.slane %v522, %v525
    %v543 = vunpack.c.l.b16 %v506
    %v544 = vunpack.c.l.b16 %v507
    %v545 = vunpack.c.l.b16 %v508
    %v546 = vunpack.c.l.b16 %v509
    %v547 = vunpack.c.l.b16 %v510
    %v548 = vunpack.c.l.b16 %v511
    %v549 = vunpack.c.l.b16 %v512
    %v550 = vunpack.c.l.b16 %v513
    %v551 = vunpack.c.l.b16 %v514
    %v552 = vunpack.c.l.b16 %v515
    %v553 = vunpack.c.l.b16 %v516
    %v554 = vunpack.c.l.b16 %v517
    %v555 = vunpack.c.l.b16 %v518
    %v556 = vunpack.c.l.b16 %v519
    %v557 = vunpack.c.l.b16 %v520
    %v558 = vunpack.c.l.b16 %v521
    %v559 = vpack.c.b16 %v544, %v543
    %v560 = vpack.c.b16 %v546, %v545
    %v561 = vpack.c.b16 %v548, %v547
    %v562 = vpack.c.b16 %v550, %v549
    %v563 = vpack.c.b16 %v552, %v551
    %v564 = vpack.c.b16 %v554, %v553
    %v565 = vpack.c.b16 %v556, %v555
    %v566 = vpack.c.b16 %v558, %v557
    %575 = vmatprep.subr.bf16.mxu0 0
    %576 = vmatpush1.bf16.msra.mxu0 %v559
    %577 = vmatprep.subr.bf16.mxu0 0
    %578 = vmatpush1.bf16.msra.mxu0 %v560
    %579 = vmatprep.subr.bf16.mxu0 0
    %580 = vmatpush1.bf16.msra.mxu0 %v561
    %581 = vmatprep.subr.bf16.mxu0 0
    %582 = vmatpush1.bf16.msra.mxu0 %v562
    %583 = vmatprep.subr.bf16.mxu0 0
    %584 = vmatpush1.bf16.msra.mxu0 %v563
    %585 = vmatprep.subr.bf16.mxu0 0
    %586 = vmatpush1.bf16.msra.mxu0 %v564
    %587 = vmatprep.subr.bf16.mxu0 0
    %588 = vmatpush1.bf16.msra.mxu0 %v565
    %589 = vmatprep.subr.bf16.mxu0 0
    %590 = vmatpush1.bf16.msra.mxu0 %v566
    %591 = vmatprep.subr.bf16.mxu0 0
    %592 = vmatpush1.bf16.msra.mxu0 0
    %593 = vmatprep.subr.bf16.mxu0 0
    %594 = vmatpush1.bf16.msra.mxu0 0
    %595 = vmatprep.subr.bf16.mxu0 0
    %596 = vmatpush1.bf16.msra.mxu0 0
    %597 = vmatprep.subr.bf16.mxu0 0
    %598 = vmatpush1.bf16.msra.mxu0 0
    %599 = vmatprep.subr.bf16.mxu0 0
    %600 = vmatpush1.bf16.msra.mxu0 0
    %601 = vmatprep.subr.bf16.mxu0 0
    %602 = vmatpush1.bf16.msra.mxu0 0
    %603 = vmatprep.subr.bf16.mxu0 0
    %604 = vmatpush1.bf16.msra.mxu0 0
    %605 = vmatprep.subr.bf16.mxu0 0
    %606 = vmatpush1.bf16.msra.mxu0 0
    %607 = vmatprep.mubr.bf16.mxu0 0
    %608 = vmatmul.mubr.bf16.gmra.mrb[0].mxu0 %v502
    %v609 = vpop.f32.mrb[0].mxu0
    %v610 = vadd.f32 %v526, %v609
    %v611 = vpop.f32.mrb[0].mxu0
    %v612 = vpop.f32.mrb[0].mxu0
    %v613 = vadd.f32 %v526, %v612
    %v614 = vpop.f32.mrb[0].mxu0
    %615 = vmatprep.mubr.bf16.mxu0 0
    %616 = vmatmul.mubr.bf16.gmra.mrb[0].mxu0 %v503
    %v617 = vpop.f32.mrb[0].mxu0
    %v618 = vadd.f32 %v526, %v617
    %v619 = vpop.f32.mrb[0].mxu0
    %v620 = vpop.f32.mrb[0].mxu0
    %v621 = vadd.f32 %v526, %v620
    %v622 = vpop.f32.mrb[0].mxu0
    %623 = vmatprep.mubr.bf16.mxu0 0
    %624 = vmatmul.mubr.bf16.gmra.mrb[0].mxu0 %v504
    %v625 = vpop.f32.mrb[0].mxu0
    %v626 = vadd.f32 %v526, %v625
    %v627 = vpop.f32.mrb[0].mxu0
    %v628 = vpop.f32.mrb[0].mxu0
    %v629 = vadd.f32 %v526, %v628
    %v630 = vpop.f32.mrb[0].mxu0
    %631 = vmatprep.mubr.bf16.mxu0 0
    %632 = vmatmul.mubr.bf16.gmra.mrb[0].mxu0 %v505
    %v633 = vpop.f32.mrb[0].mxu0
    %v634 = vadd.f32 %v526, %v633
    %v635 = vpop.f32.mrb[0].mxu0
    %v636 = vpop.f32.mrb[0].mxu0
    %v637 = vadd.f32 %v526, %v636
    %v638 = vpop.f32.mrb[0].mxu0
    %639 = vdwg.mxu0
    %640 = vst [vmem:[%s5] sm:$0xff] %v610
    %641 = vst [vmem:[%s5 + $0x8] sm:$0xff] %v613
    %642 = vst [vmem:[%s5 + $0x10] sm:$0xff] %v618
    %643 = vst [vmem:[%s5 + $0x18] sm:$0xff] %v621
    %644 = vst [vmem:[%s5 + $0x20] sm:$0xff] %v626
    %645 = vst [vmem:[%s5 + $0x28] sm:$0xff] %v629
    %646 = vst [vmem:[%s5 + $0x30] sm:$0xff] %v634
    %647 = vst [vmem:[%s5 + $0x38] sm:$0xff] %v637
    // Predicated region
    $region26: #{mlp_predictor.1} parent=1 // pred_check
      _
    $region27: #{mlp_predictor.1} parent=1 // pred_check_branch
      %649 = sbr.rel (0) target = $region29
    $region28: #{mlp_predictor.1} parent=1 // pred_region
      _
    $region29: #{mlp_predictor.1} parent=1 // pred_fallthru
      _
    // Predicated region
    $region30: #{mlp_predictor.1} parent=1 // pred_check
      _
    $region31: #{mlp_predictor.1} parent=1 // pred_check_branch
      %651 = sbr.rel (0) target = $region33
    $region32: #{mlp_predictor.1} parent=1 // pred_region
      _
    $region33: #{mlp_predictor.1} parent=1 // pred_fallthru
      _
    %652 = vsyncpa [#allocation4], 1

</llo_original>
